<compile_context>
chip_gen: v7x
topology: tpu7x:2x2x1
jax: 0.10.0
libtpu: 0.0.40
codegen_flags: <defaults>
</compile_context>

<pallas_src>
import jax
import jax.numpy as jnp
from jax import lax
from jax.experimental import pallas as pl
from jax.experimental.pallas import tpu as pltpu

LANE = 128      # TPU lane width
SUBLANE = 8     # TPU sublane width
TARGET_TILE = 1024  # target batch rows per grid step


def _round_up(n, m):
    return ((n + m - 1) // m) * m


def _mlp_kernel(x_ref, w1_ref, b1_ref, w2_ref, b2_ref, w3t_ref, b3_ref, o_ref):
    # x_ref  : (tile_b, in_f) f32
    # w1_ref : (in_f, 128) bf16   b1_ref: (1, 128) f32
    # w2_ref : (128, 128) bf16    b2_ref: (1, 128) f32
    # w3t_ref: (1, 128) bf16      b3_ref: (1,) f32 scalar in SMEM
    # o_ref  : (1, 1, tile_b) f32 -- packed: one scalar per batch row
    x = x_ref[...].astype(jnp.bfloat16)          # free VPU cast

    # fc1 + ReLU (padded output lanes stay exactly 0: zero weight + zero bias pad)
    h1 = jnp.dot(x, w1_ref[...], preferred_element_type=jnp.float32) + b1_ref[...]
    h1 = jnp.maximum(h1, 0.0).astype(jnp.bfloat16)

    # fc2 + ReLU
    h2 = jnp.dot(h1, w2_ref[...], preferred_element_type=jnp.float32) + b2_ref[...]
    h2 = jnp.maximum(h2, 0.0).astype(jnp.bfloat16)

    # fc3: contract the 128-wide (zero-padded) feature dim of both operands so
    # the result is produced directly in the packed (1, tile_b) layout.
    out_row = lax.dot_general(
        w3t_ref[...], h2,
        dimension_numbers=(((1,), (1,)), ((), ())),
        preferred_element_type=jnp.float32,
    ) + b3_ref[0]

    o_ref[0] = out_row


@jax.jit
def simple_nn_forward(x, w1, b1, w2, b2, w3, b3):
    """x: [B, input_size] f32.  w*: [in, out] f32, b*: [out] f32.  Returns [B, 1] f32."""
    B, in_f = x.shape
    h1_f, h2_f = w1.shape[1], w2.shape[1]   # 64, 32 for SimpleNN

    # --- batch tiling (minimal padding, even grid for megacore) -------------
    nb8 = _round_up(B, SUBLANE)
    # Keep the double-buffered x block comfortably inside the scoped-VMEM default.
    max_tile_vmem = max(SUBLANE, ((8 << 20) // (2 * in_f * 4)) // SUBLANE * SUBLANE)
    target = min(TARGET_TILE, max_tile_vmem)
    grid_n = max(1, -(-nb8 // target))
    if grid_n == 1 and nb8 >= 2 * SUBLANE:
        grid_n = 2                          # give v7x's two TensorCores work
    if grid_n > 1 and grid_n % 2 == 1:
        grid_n += 1                         # balanced 2-core split
    tile_b = _round_up(-(-nb8 // grid_n), SUBLANE)
    b_pad = grid_n * tile_b

    xp = x if b_pad == B else jnp.zeros((b_pad, in_f), x.dtype).at[:B].set(x)

    # --- weights / biases: pad output dims to 128 lanes, cast to bf16 -------
    w1p = jnp.zeros((in_f, LANE), jnp.bfloat16).at[:, :h1_f].set(w1.astype(jnp.bfloat16))
    w2p = jnp.zeros((LANE, LANE), jnp.bfloat16).at[:h1_f, :h2_f].set(w2.astype(jnp.bfloat16))
    w3tp = jnp.zeros((1, LANE), jnp.bfloat16).at[:, :h2_f].set(
        w3.astype(jnp.bfloat16).reshape(1, -1))
    b1p = jnp.zeros((1, LANE), jnp.float32).at[:, :h1_f].set(
        b1.reshape(1, -1).astype(jnp.float32))
    b2p = jnp.zeros((1, LANE), jnp.float32).at[:, :h2_f].set(
        b2.reshape(1, -1).astype(jnp.float32))
    b3p = b3.reshape((1,)).astype(jnp.float32)

    # Replicated (grid-invariant) VMEM blocks for weights / biases.
    def rep(shape):
        nd = len(shape)
        return pl.BlockSpec(shape, lambda i, _nd=nd: (0,) * _nd)

    out_packed = pl.pallas_call(
        _mlp_kernel,
        out_shape=jax.ShapeDtypeStruct((grid_n, 1, tile_b), jnp.float32),
        grid=(grid_n,),
        in_specs=[
            pl.BlockSpec((tile_b, in_f), lambda i: (i, 0)),   # x: full last dim
            rep(w1p.shape),
            rep(b1p.shape),
            rep(w2p.shape),
            rep(b2p.shape),
            rep(w3tp.shape),
            pl.BlockSpec(memory_space=pltpu.MemorySpace.SMEM),  # b3 scalar
        ],
        out_specs=pl.BlockSpec((1, 1, tile_b), lambda i: (i, 0, 0)),
        compiler_params=pltpu.CompilerParams(
            dimension_semantics=("parallel",),
            vmem_limit_bytes=32 * 1024 * 1024,
        ),
    )(xp, w1p, b1p, w2p, b2p, w3tp, b3p)

    # Packed scalars -> [B, 1] (cheap: 4 B/row of real data).
    return out_packed.reshape(b_pad)[:B].reshape(B, 1)


def init_params(key, input_size):
    """Deterministic init mimicking nn.Linear (uniform +-1/sqrt(fan_in)).

    Weights are returned already transposed to [in, out]; biases are 1-D [out].
    """

    def linear(key, fan_in, fan_out):
        kw, kb = jax.random.split(key)
        bound = 1.0 / jnp.sqrt(jnp.float32(fan_in))
        w = jax.random.uniform(kw, (fan_in, fan_out), jnp.float32, -bound, bound)
        b = jax.random.uniform(kb, (fan_out,), jnp.float32, -bound, bound)
        return w, b

    k1, k2, k3 = jax.random.split(key, 3)
    w1, b1 = linear(k1, input_size, 64)
    w2, b2 = linear(k2, 64, 32)
    w3, b3 = linear(k3, 32, 1)
    return w1, b1, w2, b2, w3, b3


def reference_forward(x, w1, b1, w2, b2, w3, b3):
    """Pure-JAX reference with the same bf16-operand / f32-accumulation scheme."""
    xb = x.astype(jnp.bfloat16)
    h1 = jnp.dot(xb, w1.astype(jnp.bfloat16), preferred_element_type=jnp.float32) + b1
    h1 = jnp.maximum(h1, 0.0).astype(jnp.bfloat16)
    h2 = jnp.dot(h1, w2.astype(jnp.bfloat16), preferred_element_type=jnp.float32) + b2
    h2 = jnp.maximum(h2, 0.0).astype(jnp.bfloat16)
    return jnp.dot(h2, w3.astype(jnp.bfloat16), preferred_element_type=jnp.float32) + b3


if __name__ == "__main__":
    key = jax.random.PRNGKey(0)
    kx, kp = jax.random.split(key)

    batch, input_size = 8, 32
    x = jax.random.normal(kx, (batch, input_size), jnp.float32)
    params = init_params(kp, input_size)

    out = jax.block_until_ready(simple_nn_forward(x, *params))

    ref = reference_forward(x, *params)
    assert out.shape == (batch, 1), out.shape
    assert jnp.allclose(out, ref, atol=2e-3, rtol=2e-3), "mismatch vs JAX reference"

    print("KERNEL_OK")
</pallas_src>

<mosaic_0001>
module attributes {stable_mosaic.version = 11 : i64} {
  func.func @_mlp_kernel(%arg0: i32, %arg1: memref<8x32xf32, #tpu.memory_space<vmem>>, %arg2: memref<32x128xbf16, #tpu.memory_space<vmem>>, %arg3: memref<1x128xf32, #tpu.memory_space<vmem>>, %arg4: memref<128x128xbf16, #tpu.memory_space<vmem>>, %arg5: memref<1x128xf32, #tpu.memory_space<vmem>>, %arg6: memref<1x128xbf16, #tpu.memory_space<vmem>>, %arg7: memref<1xf32, #tpu.memory_space<smem>>, %arg8: memref<1x1x8xf32, #tpu.memory_space<vmem>>) attributes {dimension_semantics = [#tpu.dimension_semantics<parallel>], iteration_bounds = array<i64: 1>, scalar_prefetch = 0 : i64, scratch_operands = 0 : i64, tpu.core_type = #tpu.core_type<tc>, window_params = [{transform_indices = @transform_0, window_bounds = array<i64: 8, 32>}, {pipeline_mode = #tpu.pipeline_mode<synchronous>, transform_indices = @transform_1, window_bounds = array<i64: 32, 128>}, {pipeline_mode = #tpu.pipeline_mode<synchronous>, transform_indices = @transform_2, window_bounds = array<i64: 1, 128>}, {pipeline_mode = #tpu.pipeline_mode<synchronous>, transform_indices = @transform_3, window_bounds = array<i64: 128, 128>}, {pipeline_mode = #tpu.pipeline_mode<synchronous>, transform_indices = @transform_4, window_bounds = array<i64: 1, 128>}, {pipeline_mode = #tpu.pipeline_mode<synchronous>, transform_indices = @transform_5, window_bounds = array<i64: 1, 128>}, {transform_indices = @transform_6, window_bounds = array<i64: 1>}, {transform_indices = @transform_7, window_bounds = array<i64: 1, 1, 8>}]} {
    %c0 = arith.constant 0 : index
    %c0_0 = arith.constant 0 : index
    %0 = vector.load %arg1[%c0, %c0_0] : memref<8x32xf32, #tpu.memory_space<vmem>>, vector<8x32xf32>
    %1 = arith.truncf %0 : vector<8x32xf32> to vector<8x32xbf16>
    %c0_1 = arith.constant 0 : index
    %c0_2 = arith.constant 0 : index
    %2 = vector.load %arg2[%c0_1, %c0_2] : memref<32x128xbf16, #tpu.memory_space<vmem>>, vector<32x128xbf16>
    %cst = arith.constant dense<0.000000e+00> : vector<8x128xf32>
    %3 = tpu.matmul %1, %2, %cst {dimension_numbers = #tpu.dot_dimension_numbers<[1], [0], [0], [1], [0, 0, 1, 1], [], []>} : vector<8x32xbf16>, vector<32x128xbf16>, vector<8x128xf32> -> vector<8x128xf32>
    %c0_3 = arith.constant 0 : index
    %c0_4 = arith.constant 0 : index
    %4 = vector.load %arg3[%c0_3, %c0_4] : memref<1x128xf32, #tpu.memory_space<vmem>>, vector<1x128xf32>
    %5 = vector.broadcast %4 : vector<1x128xf32> to vector<8x128xf32>
    %6 = arith.addf %3, %5 : vector<8x128xf32>
    %cst_5 = arith.constant 0.000000e+00 : f32
    %7 = vector.broadcast %cst_5 : f32 to vector<8x128xf32>
    %8 = arith.maximumf %6, %7 : vector<8x128xf32>
    %9 = arith.truncf %8 : vector<8x128xf32> to vector<8x128xbf16>
    %c0_6 = arith.constant 0 : index
    %c0_7 = arith.constant 0 : index
    %10 = vector.load %arg4[%c0_6, %c0_7] : memref<128x128xbf16, #tpu.memory_space<vmem>>, vector<128x128xbf16>
    %cst_8 = arith.constant dense<0.000000e+00> : vector<8x128xf32>
    %11 = tpu.matmul %9, %10, %cst_8 {dimension_numbers = #tpu.dot_dimension_numbers<[1], [0], [0], [1], [0, 0, 1, 1], [], []>} : vector<8x128xbf16>, vector<128x128xbf16>, vector<8x128xf32> -> vector<8x128xf32>
    %c0_9 = arith.constant 0 : index
    %c0_10 = arith.constant 0 : index
    %12 = vector.load %arg5[%c0_9, %c0_10] : memref<1x128xf32, #tpu.memory_space<vmem>>, vector<1x128xf32>
    %13 = vector.broadcast %12 : vector<1x128xf32> to vector<8x128xf32>
    %14 = arith.addf %11, %13 : vector<8x128xf32>
    %cst_11 = arith.constant 0.000000e+00 : f32
    %15 = vector.broadcast %cst_11 : f32 to vector<8x128xf32>
    %16 = arith.maximumf %14, %15 : vector<8x128xf32>
    %17 = arith.truncf %16 : vector<8x128xf32> to vector<8x128xbf16>
    %c0_12 = arith.constant 0 : index
    %c0_13 = arith.constant 0 : index
    %18 = vector.load %arg6[%c0_12, %c0_13] : memref<1x128xbf16, #tpu.memory_space<vmem>>, vector<1x128xbf16>
    %cst_14 = arith.constant dense<0.000000e+00> : vector<1x8xf32>
    %19 = tpu.matmul %18, %17, %cst_14 {dimension_numbers = #tpu.dot_dimension_numbers<[1], [1], [0], [0], [0, 0, 1, 0], [], []>} : vector<1x128xbf16>, vector<8x128xbf16>, vector<1x8xf32> -> vector<1x8xf32>
    %c0_15 = arith.constant 0 : index
    %20 = memref.load %arg7[%c0_15] : memref<1xf32, #tpu.memory_space<smem>>
    %21 = vector.broadcast %20 : f32 to vector<1x8xf32>
    %22 = arith.addf %19, %21 : vector<1x8xf32>
    %c0_16 = arith.constant 0 : index
    %c0_17 = arith.constant 0 : index
    %c0_18 = arith.constant 0 : index
    %23 = vector.load %arg8[%c0_16, %c0_17, %c0_18] : memref<1x1x8xf32, #tpu.memory_space<vmem>>, vector<1x1x8xf32>
    %24 = vector.shape_cast %23 : vector<1x1x8xf32> to vector<1x8xf32>
    %25 = vector.shape_cast %22 : vector<1x8xf32> to vector<1x1x8xf32>
    tpu.vector_store %arg8[%c0_16, %c0_17, %c0_18], %25 {strides = array<i32>} : memref<1x1x8xf32, #tpu.memory_space<vmem>>, vector<1x1x8xf32>,
    return
  }
  func.func @transform_0(%arg0: i32) -> (i32, i32) {
    %c0_i32 = arith.constant 0 : i32
    %c0_i32_0 = arith.constant 0 : i32
    return %arg0, %c0_i32 : i32, i32
  }
  func.func @transform_1(%arg0: i32) -> (i32, i32) {
    %c0_i32 = arith.constant 0 : i32
    %c0_i32_0 = arith.constant 0 : i32
    %c0_i32_1 = arith.constant 0 : i32
    return %c0_i32, %c0_i32_0 : i32, i32
  }
  func.func @transform_2(%arg0: i32) -> (i32, i32) {
    %c0_i32 = arith.constant 0 : i32
    %c0_i32_0 = arith.constant 0 : i32
    %c0_i32_1 = arith.constant 0 : i32
    return %c0_i32, %c0_i32_0 : i32, i32
  }
  func.func @transform_3(%arg0: i32) -> (i32, i32) {
    %c0_i32 = arith.constant 0 : i32
    %c0_i32_0 = arith.constant 0 : i32
    %c0_i32_1 = arith.constant 0 : i32
    return %c0_i32, %c0_i32_0 : i32, i32
  }
  func.func @transform_4(%arg0: i32) -> (i32, i32) {
    %c0_i32 = arith.constant 0 : i32
    %c0_i32_0 = arith.constant 0 : i32
    %c0_i32_1 = arith.constant 0 : i32
    return %c0_i32, %c0_i32_0 : i32, i32
  }
  func.func @transform_5(%arg0: i32) -> (i32, i32) {
    %c0_i32 = arith.constant 0 : i32
    %c0_i32_0 = arith.constant 0 : i32
    %c0_i32_1 = arith.constant 0 : i32
    return %c0_i32, %c0_i32_0 : i32, i32
  }
  func.func @transform_6(%arg0: i32) -> i32 {
    %c0_i32 = arith.constant 0 : i32
    %c0_i32_0 = arith.constant 0 : i32
    return %c0_i32 : i32
  }
  func.func @transform_7(%arg0: i32) -> (i32, i32, i32) {
    %c0_i32 = arith.constant 0 : i32
    %c0_i32_0 = arith.constant 0 : i32
    %c0_i32_1 = arith.constant 0 : i32
    return %arg0, %c0_i32, %c0_i32_0 : i32, i32, i32
  }
}

</mosaic_0001>

<llo_original>
// kernel: simple_nn_forward.1
$region0: #{simple_nn_forward.1}
  #allocation0 [shape = 'u32[]', space=smem, size = 0x4, offset = 0x4, fixed_abs, tag = 'smem constant byte address 0x4 - core index']
  #allocation1 [shape = 'u32[144,128]{1,0:T(1,128)}', space=vmem, size = 0x12000, scoped, tag = 'internal scratch']
  #allocation2 [shape = 'f32[1]{0:T(128)S(6)}', space=smem, size = 0x200, scoped, tag = 'scoped memory for simple_nn_forward.1']
  %s0 = inlined_call_operand.vmem [shape: f32[8,32], index: 0, kind: input, shape index: {}]
  %s1 = inlined_call_operand.vmem [shape: bf16[32,128], index: 1, kind: input, shape index: {}]
  %s2 = inlined_call_operand.vmem [shape: f32[1,128], index: 2, kind: input, shape index: {}]
  %s3 = inlined_call_operand.vmem [shape: bf16[128,128], index: 3, kind: input, shape index: {}]
  %s4 = inlined_call_operand.vmem [shape: f32[1,128], index: 4, kind: input, shape index: {}]
  %s5 = inlined_call_operand.vmem [shape: bf16[1,128], index: 5, kind: input, shape index: {}]
  %s6 = inlined_call_operand.<no memory space> [shape: f32[1], index: 6, kind: input, shape index: {}]
  %s7 = inlined_call_operand.hbm [shape: f32[1,1,8], index: 7, kind: output, shape index: {}]
  %s8 = sld [smem:[#allocation0]]
  $region38: #{simple_nn_forward.1} parent=0
    _
  %s10 = ssub.s32 1, %s8
  %s11 = scalar_select 0, %s10, %s8
  %12 = sst [smem:[#allocation2]] %s6
  $region1: #{simple_nn_forward.1} parent=0
    #allocation3 [shape = 'u8[512]{0}', space=vmem, size = 0x400, scoped, tag = 'output window, operand 0, single buffered']
    #allocation4 [shape = 's32[1]{0}', space=sflag, size = 0x4, scoped, tag = 'scoped memory for simple_nn_forward.1']
    %13 = vsyncpa [#allocation4], 0
    // Predicated region
    $region2: #{simple_nn_forward.1} parent=1 // pred_check
      _
    $region3: #{simple_nn_forward.1} parent=1 // pred_check_branch
      %15 = sbr.rel (0) target = $region5
    $region4: #{simple_nn_forward.1} parent=1 // pred_region
      _
    $region5: #{simple_nn_forward.1} parent=1 // pred_fallthru
      _
    // Predicated region
    $region6: #{simple_nn_forward.1} parent=1 // pred_check
      _
    $region7: #{simple_nn_forward.1} parent=1 // pred_check_branch
      %17 = sbr.rel (0) target = $region9
    $region8: #{simple_nn_forward.1} parent=1 // pred_region
      _
    $region9: #{simple_nn_forward.1} parent=1 // pred_fallthru
      _
    // Predicated region
    $region10: #{simple_nn_forward.1} parent=1 // pred_check
      _
    $region11: #{simple_nn_forward.1} parent=1 // pred_check_branch
      %19 = sbr.rel (0) target = $region13
    $region12: #{simple_nn_forward.1} parent=1 // pred_region
      _
    $region13: #{simple_nn_forward.1} parent=1 // pred_fallthru
      _
    // Predicated region
    $region14: #{simple_nn_forward.1} parent=1 // pred_check
      _
    $region15: #{simple_nn_forward.1} parent=1 // pred_check_branch
      %21 = sbr.rel (0) target = $region17
    $region16: #{simple_nn_forward.1} parent=1 // pred_region
      _
    $region17: #{simple_nn_forward.1} parent=1 // pred_fallthru
      _
    // Predicated region
    $region18: #{simple_nn_forward.1} parent=1 // pred_check
      _
    $region19: #{simple_nn_forward.1} parent=1 // pred_check_branch
      %23 = sbr.rel (0) target = $region21
    $region20: #{simple_nn_forward.1} parent=1 // pred_region
      _
    $region21: #{simple_nn_forward.1} parent=1 // pred_fallthru
      _
    // Predicated region
    $region22: #{simple_nn_forward.1} parent=1 // pred_check
      _
    $region23: #{simple_nn_forward.1} parent=1 // pred_check_branch
      %25 = sbr.rel (0) target = $region25
    $region24: #{simple_nn_forward.1} parent=1 // pred_region
      _
    $region25: #{simple_nn_forward.1} parent=1 // pred_fallthru
      _
    // Predicated region
    $region26: #{simple_nn_forward.1} parent=1 // pred_check
      _
    $region27: #{simple_nn_forward.1} parent=1 // pred_check_branch
      %27 = sbr.rel (0) target = $region29
    $region28: #{simple_nn_forward.1} parent=1 // pred_region
      _
    $region29: #{simple_nn_forward.1} parent=1 // pred_fallthru
      _
    %v29 = vld [vmem:[%s0] sm:$0xff]
    %v30 = vpack.c.bf16 %v29, %v29
    %v31 = vld [vmem:[%s1] sm:$0xf]
    %v32 = vld [vmem:[%s1 + $0x4] sm:$0xf]
    %v33 = vld [vmem:[%s1 + $0x8] sm:$0xf]
    %v34 = vld [vmem:[%s1 + $0xc] sm:$0xf]
    %v35 = vld [vmem:[%s2] sm:$0x1]
    %v37 = vlaneseq
    %v38 = vshrl.u32 %v37, 7
    %v39 = vsub.s32 0, %v38
    %v40 = vrot.slane %v35, %v39
    %v46 = vunpack.c.l.b16 %v31
    %v47 = vunpack.c.l.b16 %v32
    %v48 = vunpack.c.l.b16 %v33
    %v49 = vunpack.c.l.b16 %v34
    %v50 = vpack.c.b16 %v47, %v46
    %v51 = vpack.c.b16 %v49, %v48
    %vm54 = vcmask 261120
    %v56 = vsel %vm54, %v30, 0
    %58 = vmatprep.subr.bf16.mxu0 0
    %59 = vmatpush1.bf16.msra.mxu0 %v50
    %60 = vmatprep.subr.bf16.mxu0 0
    %61 = vmatpush1.bf16.msra.mxu0 %v51
    %62 = vmatprep.subr.bf16.mxu0 0
    %63 = vmatpush1.bf16.msra.mxu0 0
    %64 = vmatprep.subr.bf16.mxu0 0
    %65 = vmatpush1.bf16.msra.mxu0 0
    %66 = vmatprep.subr.bf16.mxu0 0
    %67 = vmatpush1.bf16.msra.mxu0 0
    %68 = vmatprep.subr.bf16.mxu0 0
    %69 = vmatpush1.bf16.msra.mxu0 0
    %70 = vmatprep.subr.bf16.mxu0 0
    %71 = vmatpush1.bf16.msra.mxu0 0
    %72 = vmatprep.subr.bf16.mxu0 0
    %73 = vmatpush1.bf16.msra.mxu0 0
    %74 = vmatprep.subr.bf16.mxu0 0
    %75 = vmatpush1.bf16.msra.mxu0 0
    %76 = vmatprep.subr.bf16.mxu0 0
    %77 = vmatpush1.bf16.msra.mxu0 0
    %78 = vmatprep.subr.bf16.mxu0 0
    %79 = vmatpush1.bf16.msra.mxu0 0
    %80 = vmatprep.subr.bf16.mxu0 0
    %81 = vmatpush1.bf16.msra.mxu0 0
    %82 = vmatprep.subr.bf16.mxu0 0
    %83 = vmatpush1.bf16.msra.mxu0 0
    %84 = vmatprep.subr.bf16.mxu0 0
    %85 = vmatpush1.bf16.msra.mxu0 0
    %86 = vmatprep.subr.bf16.mxu0 0
    %87 = vmatpush1.bf16.msra.mxu0 0
    %88 = vmatprep.subr.bf16.mxu0 0
    %89 = vmatpush1.bf16.msra.mxu0 0
    %90 = vmatprep.mubr.bf16.mxu0 0
    %91 = vmatmul.mubr.bf16.gmra.mrb[0].mxu0 %v56
    %v92 = vpop.f32.mrb[0].mxu0
    %v93 = vadd.f32 %v40, %v92
    %v94 = vpop.f32.mrb[0].mxu0
    %v95 = vpop.f32.mrb[0].mxu0
    %v96 = vpop.f32.mrb[0].mxu0
    %97 = vdwg.mxu0
    %v98 = vmax.f32 %v93, 0.0
    %v99 = vpack.c.bf16 %v98, %v98
    %v100 = vld [vmem:[%s3] sm:$0xf]
    %v101 = vld [vmem:[%s3 + $0x4] sm:$0xf]
    %v102 = vld [vmem:[%s3 + $0x8] sm:$0xf]
    %v103 = vld [vmem:[%s3 + $0xc] sm:$0xf]
    %v104 = vld [vmem:[%s3 + $0x10] sm:$0xf]
    %v105 = vld [vmem:[%s3 + $0x14] sm:$0xf]
    %v106 = vld [vmem:[%s3 + $0x18] sm:$0xf]
    %v107 = vld [vmem:[%s3 + $0x1c] sm:$0xf]
    %v108 = vld [vmem:[%s3 + $0x20] sm:$0xf]
    %v109 = vld [vmem:[%s3 + $0x24] sm:$0xf]
    %v110 = vld [vmem:[%s3 + $0x28] sm:$0xf]
    %v111 = vld [vmem:[%s3 + $0x2c] sm:$0xf]
    %v112 = vld [vmem:[%s3 + $0x30] sm:$0xf]
    %v113 = vld [vmem:[%s3 + $0x34] sm:$0xf]
    %v114 = vld [vmem:[%s3 + $0x38] sm:$0xf]
    %v115 = vld [vmem:[%s3 + $0x3c] sm:$0xf]
    %v116 = vld [vmem:[%s4] sm:$0x1]
    %v118 = vlaneseq
    %v119 = vshrl.u32 %v118, 7
    %v120 = vsub.s32 0, %v119
    %v121 = vrot.slane %v116, %v120
    %v139 = vunpack.c.l.b16 %v100
    %v140 = vunpack.c.l.b16 %v101
    %v141 = vunpack.c.l.b16 %v102
    %v142 = vunpack.c.l.b16 %v103
    %v143 = vunpack.c.l.b16 %v104
    %v144 = vunpack.c.l.b16 %v105
    %v145 = vunpack.c.l.b16 %v106
    %v146 = vunpack.c.l.b16 %v107
    %v147 = vunpack.c.l.b16 %v108
    %v148 = vunpack.c.l.b16 %v109
    %v149 = vunpack.c.l.b16 %v110
    %v150 = vunpack.c.l.b16 %v111
    %v151 = vunpack.c.l.b16 %v112
    %v152 = vunpack.c.l.b16 %v113
    %v153 = vunpack.c.l.b16 %v114
    %v154 = vunpack.c.l.b16 %v115
    %v155 = vpack.c.b16 %v140, %v139
    %v156 = vpack.c.b16 %v142, %v141
    %v157 = vpack.c.b16 %v144, %v143
    %v158 = vpack.c.b16 %v146, %v145
    %v159 = vpack.c.b16 %v148, %v147
    %v160 = vpack.c.b16 %v150, %v149
    %v161 = vpack.c.b16 %v152, %v151
    %v162 = vpack.c.b16 %v154, %v153
    %171 = vmatprep.subr.bf16.mxu0 0
    %172 = vmatpush1.bf16.msra.mxu0 %v155
    %173 = vmatprep.subr.bf16.mxu0 0
    %174 = vmatpush1.bf16.msra.mxu0 %v156
    %175 = vmatprep.subr.bf16.mxu0 0
    %176 = vmatpush1.bf16.msra.mxu0 %v157
    %177 = vmatprep.subr.bf16.mxu0 0
    %178 = vmatpush1.bf16.msra.mxu0 %v158
    %179 = vmatprep.subr.bf16.mxu0 0
    %180 = vmatpush1.bf16.msra.mxu0 %v159
    %181 = vmatprep.subr.bf16.mxu0 0
    %182 = vmatpush1.bf16.msra.mxu0 %v160
    %183 = vmatprep.subr.bf16.mxu0 0
    %184 = vmatpush1.bf16.msra.mxu0 %v161
    %185 = vmatprep.subr.bf16.mxu0 0
    %186 = vmatpush1.bf16.msra.mxu0 %v162
    %187 = vmatprep.subr.bf16.mxu0 0
    %188 = vmatpush1.bf16.msra.mxu0 0
    %189 = vmatprep.subr.bf16.mxu0 0
    %190 = vmatpush1.bf16.msra.mxu0 0
    %191 = vmatprep.subr.bf16.mxu0 0
    %192 = vmatpush1.bf16.msra.mxu0 0
    %193 = vmatprep.subr.bf16.mxu0 0
    %194 = vmatpush1.bf16.msra.mxu0 0
    %195 = vmatprep.subr.bf16.mxu0 0
    %196 = vmatpush1.bf16.msra.mxu0 0
    %197 = vmatprep.subr.bf16.mxu0 0
    %198 = vmatpush1.bf16.msra.mxu0 0
    %199 = vmatprep.subr.bf16.mxu0 0
    %200 = vmatpush1.bf16.msra.mxu0 0
    %201 = vmatprep.subr.bf16.mxu0 0
    %202 = vmatpush1.bf16.msra.mxu0 0
    %203 = vmatprep.mubr.bf16.mxu0 0
    %204 = vmatmul.mubr.bf16.gmra.mrb[0].mxu0 %v99
    %v205 = vpop.f32.mrb[0].mxu0
    %v206 = vadd.f32 %v121, %v205
    %v207 = vpop.f32.mrb[0].mxu0
    %v208 = vpop.f32.mrb[0].mxu0
    %v209 = vpop.f32.mrb[0].mxu0
    %210 = vdwg.mxu0
    %v211 = vmax.f32 %v206, 0.0
    %v212 = vpack.c.bf16 %v211, %v211
    %v213 = vld [vmem:[%s5] sm:$0x1]
    %s214 = sld [smem:[#allocation2]]
    %v215 = vstv %s214
    %216 = vmatprep.subr.bf16.mxu0 0
    %217 = vmatpush1.bf16.xpose.msra.mxu0 %v212
    %218 = vmatprep.subr.bf16.mxu0 0
    %219 = vmatpush1.bf16.xpose.msra.mxu0 0
    %220 = vmatprep.subr.bf16.mxu0 0
    %221 = vmatpush1.bf16.xpose.msra.mxu0 0
    %222 = vmatprep.subr.bf16.mxu0 0
    %223 = vmatpush1.bf16.xpose.msra.mxu0 0
    %224 = vmatprep.subr.bf16.mxu0 0
    %225 = vmatpush1.bf16.xpose.msra.mxu0 0
    %226 = vmatprep.subr.bf16.mxu0 0
    %227 = vmatpush1.bf16.xpose.msra.mxu0 0
    %228 = vmatprep.subr.bf16.mxu0 0
    %229 = vmatpush1.bf16.xpose.msra.mxu0 0
    %230 = vmatprep.subr.bf16.mxu0 0
    %231 = vmatpush1.bf16.xpose.msra.mxu0 0
    %232 = vmatprep.subr.bf16.mxu0 0
    %233 = vmatpush1.bf16.xpose.msra.mxu0 0
    %234 = vmatprep.subr.bf16.mxu0 0
    %235 = vmatpush1.bf16.xpose.msra.mxu0 0
    %236 = vmatprep.subr.bf16.mxu0 0
    %237 = vmatpush1.bf16.xpose.msra.mxu0 0
    %238 = vmatprep.subr.bf16.mxu0 0
    %239 = vmatpush1.bf16.xpose.msra.mxu0 0
    %240 = vmatprep.subr.bf16.mxu0 0
    %241 = vmatpush1.bf16.xpose.msra.mxu0 0
    %242 = vmatprep.subr.bf16.mxu0 0
    %243 = vmatpush1.bf16.xpose.msra.mxu0 0
    %244 = vmatprep.subr.bf16.mxu0 0
    %245 = vmatpush1.bf16.xpose.msra.mxu0 0
    %246 = vmatprep.subr.bf16.mxu0 0
    %247 = vmatpush1.bf16.xpose.msra.mxu0 0
    %248 = vmatprep.mubr.bf16.mxu0 0
    %249 = vmatmul.mubr.bf16.gmra.mrb[0].mxu0 %v213
    %v250 = vpop.f32.mrb[0].mxu0
    %v251 = vadd.f32 %v215, %v250
    %v252 = vpop.f32.mrb[0].mxu0
    %v253 = vpop.f32.mrb[0].mxu0
    %v254 = vpop.f32.mrb[0].mxu0
    %255 = vdwg.mxu0
    %vm256 = vcmask 57344
    %257 = vst.msk [vmem:[#allocation3] sm:$0x1] %vm256, %v251
    // Predicated region
    $region30: #{simple_nn_forward.1} parent=1 // pred_check
      _
    $region31: #{simple_nn_forward.1} parent=1 // pred_check_branch
      %259 = sbr.rel (0) target = $region33
    $region32: #{simple_nn_forward.1} parent=1 // pred_region
      %s261 = ssub.s32 16, 16
      %262 = vsyncadd [#allocation4], %s261
      %s264 = sshll.u32 [#allocation3], 4
      %s265 = int_to_ptr.vmem [resolvable:$true] %s264
      %267 = dma.vmem_to_hbm [thread:$0]  %s265, 16, %s7, [#allocation4]
    $region33: #{simple_nn_forward.1} parent=1 // pred_fallthru
      _
    // Predicated region
    $region34: #{simple_nn_forward.1} parent=1 // pred_check
      _
    $region35: #{simple_nn_forward.1} parent=1 // pred_check_branch
      %269 = sbr.rel (0) target = $region37
    $region36: #{simple_nn_forward.1} parent=1 // pred_region
      %270 = dma.done [#allocation4], 16
    $region37: #{simple_nn_forward.1} parent=1 // pred_fallthru
      _
    %271 = vsyncpa [#allocation4], 1

</llo_original>
